<compile_context>
chip_gen: v5e
topology: v5e:2x2
jax: 0.10.0
libtpu: 0.0.40
codegen_flags: <defaults>
</compile_context>

<pallas_src>
import functools

import jax
import jax.numpy as jnp
from jax.experimental import pallas as pl
from jax.experimental.pallas import tpu as pltpu

_LN_EPS = 1e-5


# --------------------------------------------------------------------------
# Kernel bodies
# --------------------------------------------------------------------------
def _layernorm_f32(x32, gamma, beta):
    # Single-pass moments: E[x] and E[x^2], var = E[x^2] - E[x]^2.
    mean = jnp.mean(x32, axis=-1, keepdims=True)
    mean_sq = jnp.mean(x32 * x32, axis=-1, keepdims=True)
    var = mean_sq - mean * mean
    xn = (x32 - mean) * jax.lax.rsqrt(var + _LN_EPS)
    return xn * gamma + beta


def _bias_gelu_to_bf16(h_acc_f32, bias, bf16_pointwise):
    """c_fc bias add + QuickGELU; returns bf16 for the second MXU matmul."""
    if bf16_pointwise:
        hb = h_acc_f32.astype(jnp.bfloat16) + bias          # bias already bf16
        return hb * jax.nn.sigmoid(1.702 * hb)               # bf16 VPU/EUP
    h = h_acc_f32 + bias                                      # bias f32 (v5e)
    h = h * jax.nn.sigmoid(1.702 * h)
    return h.astype(jnp.bfloat16)


def _mlp_kernel_resident(x_ref, g_ref, b_ref, wfc_ref, bfc_ref, wpj_ref,
                         bpj_ref, o_ref, *, bf16_pointwise):
    """Full-weight-residency variant: grid = (token tiles,)."""
    x32 = x_ref[...].astype(jnp.float32)
    xn = _layernorm_f32(x32, g_ref[...], b_ref[...])

    # c_fc: [tn, D] @ [D, 4D]   (bf16 MXU, f32 accumulate)
    h_acc = jnp.dot(xn.astype(jnp.bfloat16), wfc_ref[...],
                    preferred_element_type=jnp.float32)
    hb = _bias_gelu_to_bf16(h_acc, bfc_ref[...], bf16_pointwise)
    # Dropout(0.3): identity in eval mode.
    # TODO(synk): training-mode dropout (pltpu.prng_seed / prng_random_bits).

    # c_proj: [tn, 4D] @ [4D, D]
    y = jnp.dot(hb, wpj_ref[...], preferred_element_type=jnp.float32)
    o_ref[...] = (x32 + y + bpj_ref[...]).astype(o_ref.dtype)


def _mlp_kernel_htiled(x_ref, g_ref, b_ref, wfc_ref, bfc_ref, wpj_ref,
                       bpj_ref, o_ref, xn_ref, acc_ref, *, bf16_pointwise):
    """Hidden-dim streamed variant: grid = (token tiles, hidden tiles)."""
    j = pl.program_id(1)

    @pl.when(j == 0)
    def _init():
        # LayerNorm computed once per token tile, cached in bf16 scratch.
        x32 = x_ref[...].astype(jnp.float32)
        xn_ref[...] = _layernorm_f32(x32, g_ref[...], b_ref[...]).astype(jnp.bfloat16)
        acc_ref[...] = jnp.zeros_like(acc_ref)

    # c_fc slice: [tn, D] @ [D, th]
    h_acc = jnp.dot(xn_ref[...], wfc_ref[...],
                    preferred_element_type=jnp.float32)
    hb = _bias_gelu_to_bf16(h_acc, bfc_ref[...], bf16_pointwise)
    # Dropout(0.3): identity in eval mode (see TODO above).

    # partial c_proj: [tn, th] @ [th, D] accumulated in f32
    acc_ref[...] += jnp.dot(hb, wpj_ref[...], preferred_element_type=jnp.float32)

    @pl.when(j == pl.num_programs(1) - 1)
    def _finalize():
        x32 = x_ref[...].astype(jnp.float32)
        o_ref[...] = (x32 + acc_ref[...] + bpj_ref[...]).astype(o_ref.dtype)


# --------------------------------------------------------------------------
# pallas_call builders
# --------------------------------------------------------------------------
def _vmem_resident_spec():
    # Whole-array operand resident in VMEM for the kernel lifetime:
    # single copy (no double-buffering of constant weight/bias blocks).
    return pl.BlockSpec(memory_space=pltpu.MemorySpace.VMEM)


def _build_resident_call(N, D, H, tile_n, out_dtype, act_itemsize,
                         bf16_pointwise, vmem_limit):
    n_steps = pl.cdiv(N, tile_n)
    kernel = functools.partial(_mlp_kernel_resident, bf16_pointwise=bf16_pointwise)
    return pl.pallas_call(
        kernel,
        out_shape=jax.ShapeDtypeStruct((N, D), out_dtype),
        grid_spec=pl.GridSpec(
            grid=(n_steps,),
            in_specs=[
                pl.BlockSpec((tile_n, D), lambda i: (i, 0)),   # x tile
                _vmem_resident_spec(),                         # ln gamma (f32)
                _vmem_resident_spec(),                         # ln beta  (f32)
                _vmem_resident_spec(),                         # W_fc   (bf16)
                _vmem_resident_spec(),                         # b_fc
                _vmem_resident_spec(),                         # W_proj (bf16)
                _vmem_resident_spec(),                         # b_proj (f32)
            ],
            out_specs=pl.BlockSpec((tile_n, D), lambda i: (i, 0)),
        ),
        compiler_params=pltpu.CompilerParams(
            dimension_semantics=("parallel",),
            vmem_limit_bytes=vmem_limit),
        cost_estimate=pl.CostEstimate(
            flops=4 * N * D * H,
            transcendentals=N * H,
            bytes_accessed=(2 * N * D * act_itemsize + 2 * D * H * 2
                            + (3 * D + H) * 4)),
    )


def _build_htiled_call(N, D, H, tile_n, tile_h, out_dtype, act_itemsize,
                       bf16_pointwise, vmem_limit):
    n_steps = pl.cdiv(N, tile_n)
    h_steps = H // tile_h
    kernel = functools.partial(_mlp_kernel_htiled, bf16_pointwise=bf16_pointwise)
    return pl.pallas_call(
        kernel,
        out_shape=jax.ShapeDtypeStruct((N, D), out_dtype),
        grid_spec=pltpu.PrefetchScalarGridSpec(
            num_scalar_prefetch=0,
            grid=(n_steps, h_steps),                            # hidden axis last
            in_specs=[
                pl.BlockSpec((tile_n, D), lambda i, j: (i, 0)),  # x tile (const over j)
                _vmem_resident_spec(),                           # ln gamma
                _vmem_resident_spec(),                           # ln beta
                pl.BlockSpec((D, tile_h), lambda i, j: (0, j)),  # W_fc slice (bf16)
                pl.BlockSpec((1, tile_h), lambda i, j: (0, j)),  # b_fc slice
                pl.BlockSpec((tile_h, D), lambda i, j: (j, 0)),  # W_proj slice (bf16)
                _vmem_resident_spec(),                           # b_proj (f32)
            ],
            out_specs=pl.BlockSpec((tile_n, D), lambda i, j: (i, 0)),
            scratch_shapes=[
                pltpu.VMEM((tile_n, D), jnp.bfloat16),   # cached LayerNorm output
                pltpu.VMEM((tile_n, D), jnp.float32),    # c_proj accumulator
            ],
        ),
        compiler_params=pltpu.CompilerParams(
            dimension_semantics=("parallel", "arbitrary"),
            vmem_limit_bytes=vmem_limit),
        cost_estimate=pl.CostEstimate(
            flops=4 * N * D * H,
            transcendentals=N * H,
            bytes_accessed=(2 * N * D * act_itemsize
                            + n_steps * 2 * D * H * 2   # weights re-streamed / token tile
                            + (3 * D + H) * 4)),
    )


# --------------------------------------------------------------------------
# Hardware-aware configuration
# --------------------------------------------------------------------------
def _round_up(x, m):
    return ((x + m - 1) // m) * m


def _tpu_config():
    """(generation, vmem_capacity_bytes) — conservative defaults if unknown."""
    kind = ""
    try:
        kind = (getattr(jax.devices()[0], "device_kind", "") or "").lower()
    except Exception:
        pass
    if "v7" in kind:
        gen, cap = 7, 64 * 1024 * 1024
    elif "v6" in kind:
        gen, cap = 6, 128 * 1024 * 1024
    elif "v5" in kind:
        gen, cap = 5, 128 * 1024 * 1024
    elif "v4" in kind:
        gen, cap = 4, 128 * 1024 * 1024
    else:
        gen, cap = 5, 64 * 1024 * 1024     # unknown: be conservative
    try:  # authoritative hardware query when available
        cap = int(getattr(pltpu.get_tpu_info(), "vmem_capacity_bytes", cap))
    except Exception:
        pass
    return gen, cap


def _choose_config(N, D, H, act_itemsize):
    gen, vmem_cap = _tpu_config()
    bf16_pointwise = gen >= 6               # bf16 VPU/EUP only on v6e/v7x
    vmem_limit = int(0.80 * vmem_cap)       # leave compiler headroom

    tile_n = 256 if gen <= 5 else 512
    tile_n = min(tile_n, max(8, _round_up(N, 8)))
    # Keep >= 2 parallel grid steps so multi-TensorCore chips (v7x) shard.
    while tile_n > 256 and pl.cdiv(N, tile_n) < 2:
        tile_n //= 2

    # Variant-A (full residency) VMEM footprint estimate.
    resident_bytes = (
        2 * D * H * 2                        # bf16 W_fc + W_proj, single copy
        + 2 * 2 * tile_n * D * act_itemsize  # double-buffered x / out tiles
        + tile_n * H * (4 + 2)               # f32 c_fc acc + bf16 GELU copy
        + (3 * D + H) * 4)                   # gamma / beta / biases
    if resident_bytes <= vmem_limit:
        return dict(variant="resident", tile_n=tile_n, tile_h=H,
                    bf16_pointwise=bf16_pointwise, vmem_limit=vmem_limit)

    # Variant B: stream the hidden dimension (decisive on v7x's 64 MiB VMEM).
    tile_h = H
    for cand in (2048, 1024, 512, 256, 128):
        if H % cand == 0:
            tile_h = cand
            break
    return dict(variant="htiled", tile_n=tile_n, tile_h=tile_h,
                bf16_pointwise=bf16_pointwise, vmem_limit=vmem_limit)


# --------------------------------------------------------------------------
# Public wrapper
# --------------------------------------------------------------------------
def mlp_block(x, gamma, beta, w_fc, b_fc, w_proj, b_proj, *,
              force_variant=None, tile_n=None, tile_h=None, bf16_pointwise=None):
    """Residual MLP block: x + c_proj(QuickGELU(c_fc(LN(x)))).  x: [B, S, D].

    Production configs should use D % 128 == 0 (lane-dense output stores);
    smaller D is supported for correctness only.
    """
    B, S, D = x.shape
    H = w_fc.shape[1]
    N = B * S
    x2d = x.reshape(N, D)   # activations keep their dtype (bf16 stays bf16)

    cfg = _choose_config(N, D, H, x2d.dtype.itemsize)
    if force_variant is not None:
        cfg["variant"] = force_variant
    if tile_n is not None:
        cfg["tile_n"] = tile_n
    if tile_h is not None:
        cfg["tile_h"] = tile_h
    if bf16_pointwise is not None:
        cfg["bf16_pointwise"] = bf16_pointwise

    # One-time casts in the wrapper (no per-step re-casts inside the kernel):
    # bf16 weights for the MXU; gamma/beta/b_proj in f32; b_fc matches the
    # pointwise dtype (bf16 on v6e/v7x, f32 on v5e).
    w_fc_bf = w_fc.astype(jnp.bfloat16)
    w_pj_bf = w_proj.astype(jnp.bfloat16)
    gamma32 = gamma.reshape(1, D).astype(jnp.float32)
    beta32 = beta.reshape(1, D).astype(jnp.float32)
    bfc_dt = jnp.bfloat16 if cfg["bf16_pointwise"] else jnp.float32
    b_fc_c = b_fc.reshape(1, H).astype(bfc_dt)
    b_pj32 = b_proj.reshape(1, D).astype(jnp.float32)

    args = (x2d, gamma32, beta32, w_fc_bf, b_fc_c, w_pj_bf, b_pj32)

    if cfg["variant"] == "resident":
        call = _build_resident_call(N, D, H, cfg["tile_n"], x.dtype,
                                    x2d.dtype.itemsize, cfg["bf16_pointwise"],
                                    cfg["vmem_limit"])
    else:
        call = _build_htiled_call(N, D, H, cfg["tile_n"], cfg["tile_h"], x.dtype,
                                  x2d.dtype.itemsize, cfg["bf16_pointwise"],
                                  cfg["vmem_limit"])

    # grid = cdiv(N, tile_n): no jnp.pad / out[:N] HBM round trip; the partial
    # last token block is row-independent and masked on store.
    out = call(*args)
    return out.reshape(B, S, D)


# --------------------------------------------------------------------------
# Parameter init + pure-JAX reference (same numerics -> isolates kernel bugs)
# --------------------------------------------------------------------------
def init_params(key, d_model):
    h = 4 * d_model
    k1, k2, k3, k4 = jax.random.split(key, 4)
    # nn.Linear default init; weights stored [in, out] so y = x @ W + b.
    lim_fc = 1.0 / (d_model ** 0.5)
    lim_pj = 1.0 / (h ** 0.5)
    w_fc = jax.random.uniform(k1, (d_model, h), jnp.float32, -lim_fc, lim_fc)
    b_fc = jax.random.uniform(k2, (1, h), jnp.float32, -lim_fc, lim_fc)
    w_proj = jax.random.uniform(k3, (h, d_model), jnp.float32, -lim_pj, lim_pj)
    b_proj = jax.random.uniform(k4, (1, d_model), jnp.float32, -lim_pj, lim_pj)
    gamma = jnp.ones((1, d_model), jnp.float32)
    beta = jnp.zeros((1, d_model), jnp.float32)
    return gamma, beta, w_fc, b_fc, w_proj, b_proj


def reference(x, gamma, beta, w_fc, b_fc, w_proj, b_proj, *, bf16_pointwise):
    x32 = x.astype(jnp.float32)
    mean = jnp.mean(x32, -1, keepdims=True)
    var = jnp.mean(x32 * x32, -1, keepdims=True) - mean * mean
    xn = (x32 - mean) * jax.lax.rsqrt(var + _LN_EPS) * gamma + beta
    h = jnp.dot(xn.astype(jnp.bfloat16), w_fc.astype(jnp.bfloat16),
                preferred_element_type=jnp.float32)
    if bf16_pointwise:
        hb = h.astype(jnp.bfloat16) + b_fc.astype(jnp.bfloat16)
        hb = hb * jax.nn.sigmoid(1.702 * hb)
    else:
        hf = h + b_fc
        hb = (hf * jax.nn.sigmoid(1.702 * hf)).astype(jnp.bfloat16)
    y = jnp.dot(hb, w_proj.astype(jnp.bfloat16),
                preferred_element_type=jnp.float32)
    return (x32 + y + b_proj).astype(x.dtype)


# --------------------------------------------------------------------------
if __name__ == "__main__":
    key = jax.random.PRNGKey(0)
    kx1, kp1, kx2, kp2 = jax.random.split(key, 4)

    gen, _ = _tpu_config()
    bf16_pw = gen >= 6

    # Test 1: auto config (full-residency variant), f32 activations.
    B, S, D = 2, 8, 32                       # correctness-only shapes (D < 128)
    x = jax.random.normal(kx1, (B, S, D), jnp.float32)
    params = init_params(kp1, D)
    out = jax.block_until_ready(mlp_block(x, *params, bf16_pointwise=bf16_pw))
    ref = reference(x, *params, bf16_pointwise=bf16_pw)
    assert out.shape == (B, S, D)
    assert jnp.allclose(out, ref, atol=2e-2, rtol=2e-2), "resident variant mismatch"

    # Test 2: H-tiled variant, bf16 activations, partial last token block.
    B2, S2, D2 = 2, 24, 64                   # N=48 -> tiles of 32 (last partial)
    x2 = jax.random.normal(kx2, (B2, S2, D2), jnp.float32).astype(jnp.bfloat16)
    params2 = init_params(kp2, D2)
    out2 = jax.block_until_ready(
        mlp_block(x2, *params2, force_variant="htiled",
                  tile_n=32, tile_h=128, bf16_pointwise=bf16_pw))
    ref2 = reference(x2, *params2, bf16_pointwise=bf16_pw)
    assert out2.shape == (B2, S2, D2) and out2.dtype == jnp.bfloat16
    assert jnp.allclose(out2.astype(jnp.float32), ref2.astype(jnp.float32),
                        atol=5e-2, rtol=5e-2), "htiled variant mismatch"

    print("KERNEL_OK")
</pallas_src>

<mosaic_0001>
module attributes {stable_mosaic.version = 11 : i64} {
  func.func @_mlp_kernel_resident(%arg0: i32, %arg1: memref<16x32xf32, #tpu.memory_space<vmem>>, %arg2: memref<1x32xf32, #tpu.memory_space<vmem>>, %arg3: memref<1x32xf32, #tpu.memory_space<vmem>>, %arg4: memref<32x128xbf16, #tpu.memory_space<vmem>>, %arg5: memref<1x128xf32, #tpu.memory_space<vmem>>, %arg6: memref<128x32xbf16, #tpu.memory_space<vmem>>, %arg7: memref<1x32xf32, #tpu.memory_space<vmem>>, %arg8: memref<16x32xf32, #tpu.memory_space<vmem>>) attributes {dimension_semantics = [#tpu.dimension_semantics<parallel>], iteration_bounds = array<i64: 1>, scalar_prefetch = 0 : i64, scratch_operands = 0 : i64, tpu.core_type = #tpu.core_type<tc>, window_params = [{transform_indices = @transform_0, window_bounds = array<i64: 16, 32>}, {pipeline_mode = #tpu.pipeline_mode<synchronous>, transform_indices = @transform_1, window_bounds = array<i64: 1, 32>}, {pipeline_mode = #tpu.pipeline_mode<synchronous>, transform_indices = @transform_2, window_bounds = array<i64: 1, 32>}, {pipeline_mode = #tpu.pipeline_mode<synchronous>, transform_indices = @transform_3, window_bounds = array<i64: 32, 128>}, {pipeline_mode = #tpu.pipeline_mode<synchronous>, transform_indices = @transform_4, window_bounds = array<i64: 1, 128>}, {pipeline_mode = #tpu.pipeline_mode<synchronous>, transform_indices = @transform_5, window_bounds = array<i64: 128, 32>}, {pipeline_mode = #tpu.pipeline_mode<synchronous>, transform_indices = @transform_6, window_bounds = array<i64: 1, 32>}, {transform_indices = @transform_7, window_bounds = array<i64: 16, 32>}]} {
    %c0 = arith.constant 0 : index
    %c0_0 = arith.constant 0 : index
    %0 = vector.load %arg1[%c0, %c0_0] : memref<16x32xf32, #tpu.memory_space<vmem>>, vector<16x32xf32>
    %c0_1 = arith.constant 0 : index
    %c0_2 = arith.constant 0 : index
    %1 = vector.load %arg2[%c0_1, %c0_2] : memref<1x32xf32, #tpu.memory_space<vmem>>, vector<1x32xf32>
    %c0_3 = arith.constant 0 : index
    %c0_4 = arith.constant 0 : index
    %2 = vector.load %arg3[%c0_3, %c0_4] : memref<1x32xf32, #tpu.memory_space<vmem>>, vector<1x32xf32>
    %cst = arith.constant dense<0.000000e+00> : vector<16xf32>
    %3 = vector.multi_reduction <add>, %0, %cst [1] : vector<16x32xf32> to vector<16xf32>
    %4 = vector.shape_cast %3 : vector<16xf32> to vector<16x1xf32>
    %cst_5 = arith.constant 3.200000e+01 : f32
    %5 = vector.broadcast %cst_5 : f32 to vector<16x1xf32>
    %6 = arith.divf %4, %5 : vector<16x1xf32>
    %7 = arith.mulf %0, %0 : vector<16x32xf32>
    %cst_6 = arith.constant dense<0.000000e+00> : vector<16xf32>
    %8 = vector.multi_reduction <add>, %7, %cst_6 [1] : vector<16x32xf32> to vector<16xf32>
    %9 = vector.shape_cast %8 : vector<16xf32> to vector<16x1xf32>
    %cst_7 = arith.constant 3.200000e+01 : f32
    %10 = vector.broadcast %cst_7 : f32 to vector<16x1xf32>
    %11 = arith.divf %9, %10 : vector<16x1xf32>
    %12 = arith.mulf %6, %6 : vector<16x1xf32>
    %13 = arith.subf %11, %12 : vector<16x1xf32>
    %14 = vector.broadcast %6 : vector<16x1xf32> to vector<16x32xf32>
    %15 = arith.subf %0, %14 : vector<16x32xf32>
    %cst_8 = arith.constant 9.99999974E-6 : f32
    %16 = vector.broadcast %cst_8 : f32 to vector<16x1xf32>
    %17 = arith.addf %13, %16 : vector<16x1xf32>
    %18 = math.rsqrt %17 : vector<16x1xf32>
    %19 = vector.broadcast %18 : vector<16x1xf32> to vector<16x32xf32>
    %20 = arith.mulf %15, %19 : vector<16x32xf32>
    %21 = vector.broadcast %1 : vector<1x32xf32> to vector<16x32xf32>
    %22 = arith.mulf %20, %21 : vector<16x32xf32>
    %23 = vector.broadcast %2 : vector<1x32xf32> to vector<16x32xf32>
    %24 = arith.addf %22, %23 : vector<16x32xf32>
    %25 = arith.truncf %24 : vector<16x32xf32> to vector<16x32xbf16>
    %c0_9 = arith.constant 0 : index
    %c0_10 = arith.constant 0 : index
    %26 = vector.load %arg4[%c0_9, %c0_10] : memref<32x128xbf16, #tpu.memory_space<vmem>>, vector<32x128xbf16>
    %cst_11 = arith.constant dense<0.000000e+00> : vector<16x128xf32>
    %27 = tpu.matmul %25, %26, %cst_11 {dimension_numbers = #tpu.dot_dimension_numbers<[1], [0], [0], [1], [0, 0, 1, 1], [], []>} : vector<16x32xbf16>, vector<32x128xbf16>, vector<16x128xf32> -> vector<16x128xf32>
    %c0_12 = arith.constant 0 : index
    %c0_13 = arith.constant 0 : index
    %28 = vector.load %arg5[%c0_12, %c0_13] : memref<1x128xf32, #tpu.memory_space<vmem>>, vector<1x128xf32>
    %29 = vector.broadcast %28 : vector<1x128xf32> to vector<16x128xf32>
    %30 = arith.addf %27, %29 : vector<16x128xf32>
    %cst_14 = arith.constant 1.702000e+00 : f32
    %31 = vector.broadcast %cst_14 : f32 to vector<16x128xf32>
    %32 = arith.mulf %31, %30 : vector<16x128xf32>
    %33 = arith.negf %32 : vector<16x128xf32>
    %34 = math.exp %33 : vector<16x128xf32>
    %cst_15 = arith.constant 1.000000e+00 : f32
    %35 = vector.broadcast %cst_15 : f32 to vector<16x128xf32>
    %36 = arith.addf %35, %34 : vector<16x128xf32>
    %37 = arith.divf %35, %36 : vector<16x128xf32>
    %38 = arith.mulf %30, %37 : vector<16x128xf32>
    %39 = arith.truncf %38 : vector<16x128xf32> to vector<16x128xbf16>
    %c0_16 = arith.constant 0 : index
    %c0_17 = arith.constant 0 : index
    %40 = vector.load %arg6[%c0_16, %c0_17] : memref<128x32xbf16, #tpu.memory_space<vmem>>, vector<128x32xbf16>
    %cst_18 = arith.constant dense<0.000000e+00> : vector<16x32xf32>
    %41 = tpu.matmul %39, %40, %cst_18 {dimension_numbers = #tpu.dot_dimension_numbers<[1], [0], [0], [1], [0, 0, 1, 1], [], []>} : vector<16x128xbf16>, vector<128x32xbf16>, vector<16x32xf32> -> vector<16x32xf32>
    %42 = arith.addf %0, %41 : vector<16x32xf32>
    %c0_19 = arith.constant 0 : index
    %c0_20 = arith.constant 0 : index
    %43 = vector.load %arg7[%c0_19, %c0_20] : memref<1x32xf32, #tpu.memory_space<vmem>>, vector<1x32xf32>
    %44 = vector.broadcast %43 : vector<1x32xf32> to vector<16x32xf32>
    %45 = arith.addf %42, %44 : vector<16x32xf32>
    %c0_21 = arith.constant 0 : index
    %c0_22 = arith.constant 0 : index
    %46 = vector.load %arg8[%c0_21, %c0_22] : memref<16x32xf32, #tpu.memory_space<vmem>>, vector<16x32xf32>
    tpu.vector_store %arg8[%c0_21, %c0_22], %45 {strides = array<i32>} : memref<16x32xf32, #tpu.memory_space<vmem>>, vector<16x32xf32>,
    return
  }
  func.func @transform_0(%arg0: i32) -> (i32, i32) {
    %c0_i32 = arith.constant 0 : i32
    %c0_i32_0 = arith.constant 0 : i32
    return %arg0, %c0_i32 : i32, i32
  }
  func.func @transform_1(%arg0: i32) -> (i32, i32) {
    %c0_i32 = arith.constant 0 : i32
    %c0_i32_0 = arith.constant 0 : i32
    %c0_i32_1 = arith.constant 0 : i32
    return %c0_i32, %c0_i32_0 : i32, i32
  }
  func.func @transform_2(%arg0: i32) -> (i32, i32) {
    %c0_i32 = arith.constant 0 : i32
    %c0_i32_0 = arith.constant 0 : i32
    %c0_i32_1 = arith.constant 0 : i32
    return %c0_i32, %c0_i32_0 : i32, i32
  }
  func.func @transform_3(%arg0: i32) -> (i32, i32) {
    %c0_i32 = arith.constant 0 : i32
    %c0_i32_0 = arith.constant 0 : i32
    %c0_i32_1 = arith.constant 0 : i32
    return %c0_i32, %c0_i32_0 : i32, i32
  }
  func.func @transform_4(%arg0: i32) -> (i32, i32) {
    %c0_i32 = arith.constant 0 : i32
    %c0_i32_0 = arith.constant 0 : i32
    %c0_i32_1 = arith.constant 0 : i32
    return %c0_i32, %c0_i32_0 : i32, i32
  }
  func.func @transform_5(%arg0: i32) -> (i32, i32) {
    %c0_i32 = arith.constant 0 : i32
    %c0_i32_0 = arith.constant 0 : i32
    %c0_i32_1 = arith.constant 0 : i32
    return %c0_i32, %c0_i32_0 : i32, i32
  }
  func.func @transform_6(%arg0: i32) -> (i32, i32) {
    %c0_i32 = arith.constant 0 : i32
    %c0_i32_0 = arith.constant 0 : i32
    %c0_i32_1 = arith.constant 0 : i32
    return %c0_i32, %c0_i32_0 : i32, i32
  }
  func.func @transform_7(%arg0: i32) -> (i32, i32) {
    %c0_i32 = arith.constant 0 : i32
    %c0_i32_0 = arith.constant 0 : i32
    return %arg0, %c0_i32 : i32, i32
  }
}

</mosaic_0001>

<llo_original>
// kernel: tpu_custom_call.1
$region0: #{tpu_custom_call.1}
  #allocation0 [shape = 'u32[]', space=smem, size = 0x4, offset = 0x4, fixed_abs, tag = 'smem constant byte address 0x4 - core index']
  #allocation1 [shape = 'u32[72,128]{1,0:T(1,128)}', space=vmem, size = 0x9000, scoped, tag = 'internal scratch']
  %s0 = inlined_call_operand.vmem [shape: f32[16,32], index: 0, kind: input, shape index: {}]
  %s1 = inlined_call_operand.vmem [shape: f32[1,32], index: 1, kind: input, shape index: {}]
  %s2 = inlined_call_operand.vmem [shape: f32[1,32], index: 2, kind: input, shape index: {}]
  %s3 = inlined_call_operand.vmem [shape: bf16[32,128], index: 3, kind: input, shape index: {}]
  %s4 = inlined_call_operand.vmem [shape: f32[1,128], index: 4, kind: input, shape index: {}]
  %s5 = inlined_call_operand.vmem [shape: bf16[128,32], index: 5, kind: input, shape index: {}]
  %s6 = inlined_call_operand.vmem [shape: f32[1,32], index: 6, kind: input, shape index: {}]
  %s7 = inlined_call_operand.hbm [shape: f32[16,32], index: 7, kind: output, shape index: {}]
  %s8 = sld [smem:[#allocation0]]
  $region38: #{tpu_custom_call.1} parent=0
    _
  %s10 = ssub.s32 1, %s8
  %s11 = scalar_select 0, %s10, %s8
  $region1: #{tpu_custom_call.1} parent=0
    #allocation2 [shape = 'u8[8192]{0}', space=vmem, size = 0x2000, scoped, tag = 'output window, operand 0, single buffered']
    #allocation3 [shape = 's32[1]{0}', space=sflag, size = 0x4, scoped, tag = 'scoped memory for tpu_custom_call.1']
    %12 = vsyncpa [#allocation3], 0
    // Predicated region
    $region2: #{tpu_custom_call.1} parent=1 // pred_check
      _
    $region3: #{tpu_custom_call.1} parent=1 // pred_check_branch
      %14 = sbr.rel (0) target = $region5
    $region4: #{tpu_custom_call.1} parent=1 // pred_region
      _
    $region5: #{tpu_custom_call.1} parent=1 // pred_fallthru
      _
    // Predicated region
    $region6: #{tpu_custom_call.1} parent=1 // pred_check
      _
    $region7: #{tpu_custom_call.1} parent=1 // pred_check_branch
      %16 = sbr.rel (0) target = $region9
    $region8: #{tpu_custom_call.1} parent=1 // pred_region
      _
    $region9: #{tpu_custom_call.1} parent=1 // pred_fallthru
      _
    // Predicated region
    $region10: #{tpu_custom_call.1} parent=1 // pred_check
      _
    $region11: #{tpu_custom_call.1} parent=1 // pred_check_branch
      %18 = sbr.rel (0) target = $region13
    $region12: #{tpu_custom_call.1} parent=1 // pred_region
      _
    $region13: #{tpu_custom_call.1} parent=1 // pred_fallthru
      _
    // Predicated region
    $region14: #{tpu_custom_call.1} parent=1 // pred_check
      _
    $region15: #{tpu_custom_call.1} parent=1 // pred_check_branch
      %20 = sbr.rel (0) target = $region17
    $region16: #{tpu_custom_call.1} parent=1 // pred_region
      _
    $region17: #{tpu_custom_call.1} parent=1 // pred_fallthru
      _
    // Predicated region
    $region18: #{tpu_custom_call.1} parent=1 // pred_check
      _
    $region19: #{tpu_custom_call.1} parent=1 // pred_check_branch
      %22 = sbr.rel (0) target = $region21
    $region20: #{tpu_custom_call.1} parent=1 // pred_region
      _
    $region21: #{tpu_custom_call.1} parent=1 // pred_fallthru
      _
    // Predicated region
    $region22: #{tpu_custom_call.1} parent=1 // pred_check
      _
    $region23: #{tpu_custom_call.1} parent=1 // pred_check_branch
      %24 = sbr.rel (0) target = $region25
    $region24: #{tpu_custom_call.1} parent=1 // pred_region
      _
    $region25: #{tpu_custom_call.1} parent=1 // pred_fallthru
      _
    // Predicated region
    $region26: #{tpu_custom_call.1} parent=1 // pred_check
      _
    $region27: #{tpu_custom_call.1} parent=1 // pred_check_branch
      %26 = sbr.rel (0) target = $region29
    $region28: #{tpu_custom_call.1} parent=1 // pred_region
      _
    $region29: #{tpu_custom_call.1} parent=1 // pred_fallthru
      _
    %v28 = vld [vmem:[%s0] sm:$0xff]
    %v29 = vld [vmem:[%s0 + $0x8] sm:$0xff]
    %v30 = vld [vmem:[%s1] sm:$0x1]
    %v31 = vld [vmem:[%s2] sm:$0x1]
    %vm32 = vcmask 261120
    %v33 = vsel %vm32, %v28, 0.0
    %34 = vadd.xlane.f32.xlu0 %v33
    %v35 = vpop.xlane.xlu0 %34
    %v36 = vsel %vm32, %v29, 0.0
    %37 = vadd.xlane.f32.xlu0 %v36
    %v38 = vpop.xlane.xlu0 %37
    %v39 = vrcp.pop 32.0
    %v40 = vmul.f32 32.0, %v39
    %v41 = vsub.f32 1.0, %v40
    %v42 = vmul.f32 %v39, %v41
    %v43 = vadd.f32 %v39, %v42
    %vm44 = vweird.f32 %v39
    %v45 = vsel %vm44, %v39, %v43
    %v46 = vmul.f32 %v35, %v45
    %v47 = vmul.f32 %v38, %v45
    %v48 = vmul.f32 %v28, %v28
    %v49 = vmul.f32 %v29, %v29
    %v50 = vsel %vm32, %v48, 0.0
    %51 = vadd.xlane.f32.xlu0 %v50
    %v52 = vpop.xlane.xlu0 %51
    %v53 = vsel %vm32, %v49, 0.0
    %54 = vadd.xlane.f32.xlu0 %v53
    %v55 = vpop.xlane.xlu0 %54
    %v56 = vmul.f32 %v52, %v45
    %v57 = vmul.f32 %v55, %v45
    %v58 = vmul.f32 %v46, %v46
    %v59 = vmul.f32 %v47, %v47
    %v60 = vsub.f32 %v56, %v58
    %v61 = vsub.f32 %v57, %v59
    %v62 = vsub.f32 %v28, %v46
    %v63 = vsub.f32 %v29, %v47
    %v64 = vadd.f32 %v60, 1e-05
    %v65 = vadd.f32 %v61, 1e-05
    %v66 = vrsqrt.pop %v64
    %v67 = vmul.f32 %v66, %v64
    %v68 = vmul.f32 %v67, %v66
    %v69 = vmul.f32 0.5, %v68
    %v70 = vsub.f32 1.5, %v69
    %v71 = vmul.f32 %v66, %v70
    %vm72 = vweird.f32 %v64
    %vm73 = vweird.f32 %v66
    %vm74 = vmor %vm72, %vm73
    %v75 = vsel %vm74, %v66, %v71
    %v76 = vrsqrt.pop %v65
    %v77 = vmul.f32 %v76, %v65
    %v78 = vmul.f32 %v77, %v76
    %v79 = vmul.f32 0.5, %v78
    %v80 = vsub.f32 1.5, %v79
    %v81 = vmul.f32 %v76, %v80
    %vm82 = vweird.f32 %v65
    %vm83 = vweird.f32 %v76
    %vm84 = vmor %vm82, %vm83
    %v85 = vsel %vm84, %v76, %v81
    %v86 = vmul.f32 %v62, %v75
    %v87 = vmul.f32 %v63, %v85
    %v89 = vperm.slane %v30, 0
    %v91 = vmul.f32 %v86, %v89
    %v92 = vmul.f32 %v87, %v89
    %v94 = vperm.slane %v31, 0
    %v96 = vadd.f32 %v91, %v94
    %v97 = vadd.f32 %v92, %v94
    %v98 = vpack.c.bf16 %v97, %v96
    %v99 = vld [vmem:[%s3] sm:$0xf]
    %v100 = vld [vmem:[%s3 + $0x4] sm:$0xf]
    %v101 = vld [vmem:[%s3 + $0x8] sm:$0xf]
    %v102 = vld [vmem:[%s3 + $0xc] sm:$0xf]
    %v103 = vld [vmem:[%s4] sm:$0x1]
    %v105 = vperm.slane %v103, 0
    %v111 = vunpack.c.l.b16 %v99
    %v112 = vunpack.c.l.b16 %v100
    %v113 = vunpack.c.l.b16 %v101
    %v114 = vunpack.c.l.b16 %v102
    %v115 = vpack.c.b16 %v112, %v111
    %v116 = vpack.c.b16 %v114, %v113
    %v120 = vsel %vm32, %v98, 0
    %122 = vmatpush.bf16.msra.mxu0 0
    %123 = vmatpush.bf16.msra.mxu0 0
    %124 = vmatpush.bf16.msra.mxu0 0
    %125 = vmatpush.bf16.msra.mxu0 0
    %126 = vmatpush.bf16.msra.mxu0 0
    %127 = vmatpush.bf16.msra.mxu0 0
    %128 = vmatpush.bf16.msra.mxu0 %v116
    %129 = vmatpush.bf16.msra.mxu0 %v115
    %130 = vmatmul.bf16.gmra.mxu0 %v120
    %v131 = vpop.f32.mrf.mxu0
    %v132 = vadd.f32 %v105, %v131
    %v133 = vpop.f32.mrf.mxu0
    %v134 = vadd.f32 %v105, %v133
    %135 = vdwg.mxu0
    %v136 = vmul.f32 %v132, 1.702
    %v137 = vmul.f32 %v134, 1.702
    %v138 = vxor.u32 %v136, 2147483648
    %v139 = vxor.u32 %v137, 2147483648
    %v140 = vmul.f32 %v138, 1.442695
    %v141 = vpow.pop %v140
    %v142 = vmul.f32 %v139, 1.442695
    %v143 = vpow.pop %v142
    %v144 = vadd.f32 %v141, 1.0
    %v145 = vadd.f32 %v143, 1.0
    %v146 = vrcp.pop %v144
    %v147 = vmul.f32 %v144, %v146
    %v148 = vsub.f32 1.0, %v147
    %v149 = vmul.f32 %v146, %v148
    %v150 = vadd.f32 %v146, %v149
    %vm151 = vweird.f32 %v144
    %vm152 = vweird.f32 %v146
    %vm153 = vmor %vm151, %vm152
    %v154 = vsel %vm153, %v146, %v150
    %v155 = vand.u32 2147483647, %v144
    %vm156 = vcmp.eq.f32.partialorder %v155, 8.507059e+37
    %v157 = vand.u32 %v144, 2147483648
    %v158 = vor.u32 1.1754944e-38, %v157
    %v159 = vsel %vm156, %v158, %v154
    %v160 = vmul.f32 1.0, %v159
    %v161 = vrcp.pop %v145
    %v162 = vmul.f32 %v145, %v161
    %v163 = vsub.f32 1.0, %v162
    %v164 = vmul.f32 %v161, %v163
    %v165 = vadd.f32 %v161, %v164
    %vm166 = vweird.f32 %v145
    %vm167 = vweird.f32 %v161
    %vm168 = vmor %vm166, %vm167
    %v169 = vsel %vm168, %v161, %v165
    %v170 = vand.u32 2147483647, %v145
    %vm171 = vcmp.eq.f32.partialorder %v170, 8.507059e+37
    %v172 = vand.u32 %v145, 2147483648
    %v173 = vor.u32 1.1754944e-38, %v172
    %v174 = vsel %vm171, %v173, %v169
    %v175 = vmul.f32 1.0, %v174
    %v176 = vmul.f32 %v132, %v160
    %v177 = vmul.f32 %v134, %v175
    %v178 = vpack.c.bf16 %v177, %v176
    %v179 = vld [vmem:[%s5] sm:$0xf]
    %v180 = vld [vmem:[%s5 + $0x4] sm:$0xf]
    %v181 = vld [vmem:[%s5 + $0x8] sm:$0xf]
    %v182 = vld [vmem:[%s5 + $0xc] sm:$0xf]
    %v183 = vld [vmem:[%s5 + $0x10] sm:$0xf]
    %v184 = vld [vmem:[%s5 + $0x14] sm:$0xf]
    %v185 = vld [vmem:[%s5 + $0x18] sm:$0xf]
    %v186 = vld [vmem:[%s5 + $0x1c] sm:$0xf]
    %v187 = vld [vmem:[%s5 + $0x20] sm:$0xf]
    %v188 = vld [vmem:[%s5 + $0x24] sm:$0xf]
    %v189 = vld [vmem:[%s5 + $0x28] sm:$0xf]
    %v190 = vld [vmem:[%s5 + $0x2c] sm:$0xf]
    %v191 = vld [vmem:[%s5 + $0x30] sm:$0xf]
    %v192 = vld [vmem:[%s5 + $0x34] sm:$0xf]
    %v193 = vld [vmem:[%s5 + $0x38] sm:$0xf]
    %v194 = vld [vmem:[%s5 + $0x3c] sm:$0xf]
    %v211 = vunpack.c.l.b16 %v179
    %v212 = vunpack.c.l.b16 %v180
    %v213 = vunpack.c.l.b16 %v181
    %v214 = vunpack.c.l.b16 %v182
    %v215 = vunpack.c.l.b16 %v183
    %v216 = vunpack.c.l.b16 %v184
    %v217 = vunpack.c.l.b16 %v185
    %v218 = vunpack.c.l.b16 %v186
    %v219 = vunpack.c.l.b16 %v187
    %v220 = vunpack.c.l.b16 %v188
    %v221 = vunpack.c.l.b16 %v189
    %v222 = vunpack.c.l.b16 %v190
    %v223 = vunpack.c.l.b16 %v191
    %v224 = vunpack.c.l.b16 %v192
    %v225 = vunpack.c.l.b16 %v193
    %v226 = vunpack.c.l.b16 %v194
    %v227 = vpack.c.b16 %v212, %v211
    %v228 = vpack.c.b16 %v214, %v213
    %v229 = vpack.c.b16 %v216, %v215
    %v230 = vpack.c.b16 %v218, %v217
    %v231 = vpack.c.b16 %v220, %v219
    %v232 = vpack.c.b16 %v222, %v221
    %v233 = vpack.c.b16 %v224, %v223
    %v234 = vpack.c.b16 %v226, %v225
    %243 = vmatpush.bf16.msra.mxu0 %v234
    %244 = vmatpush.bf16.msra.mxu0 %v233
    %245 = vmatpush.bf16.msra.mxu0 %v232
    %246 = vmatpush.bf16.msra.mxu0 %v231
    %247 = vmatpush.bf16.msra.mxu0 %v230
    %248 = vmatpush.bf16.msra.mxu0 %v229
    %249 = vmatpush.bf16.msra.mxu0 %v228
    %250 = vmatpush.bf16.msra.mxu0 %v227
    %251 = vmatmul.bf16.gmra.mxu0 %v178
    %v252 = vpop.f32.mrf.mxu0
    %v253 = vadd.f32 0.0, %v252
    %v254 = vpop.f32.mrf.mxu0
    %v255 = vadd.f32 0.0, %v254
    %256 = vdwg.mxu0
    %v257 = vadd.f32 %v28, %v253
    %v258 = vadd.f32 %v29, %v255
    %v259 = vld [vmem:[%s6] sm:$0x1]
    %v261 = vperm.slane %v259, 0
    %v263 = vadd.f32 %v257, %v261
    %v264 = vadd.f32 %v258, %v261
    %265 = vst.msk [vmem:[#allocation2] sm:$0xff] %vm32, %v263
    %266 = vst.msk [vmem:[#allocation2 + $0x8] sm:$0xff] %vm32, %v264
    // Predicated region
    $region30: #{tpu_custom_call.1} parent=1 // pred_check
      _
    $region31: #{tpu_custom_call.1} parent=1 // pred_check_branch
      %268 = sbr.rel (0) target = $region33
    $region32: #{tpu_custom_call.1} parent=1 // pred_region
      %270 = vsyncadd [#allocation3], 0
      %s271 = sshll.u32 [#allocation2], 4
      %s272 = int_to_ptr.vmem [resolvable:$true] %s271
      %s273 = sshll.u32 %s7, 4
      %s274 = int_to_ptr.hbm [resolvable:$true] %s273
      %279 = dma.vmem_to_hbm [thread:$0]  %s272, 256, %s274, [#allocation3], 128, 128, 8
    $region33: #{tpu_custom_call.1} parent=1 // pred_fallthru
      _
    // Predicated region
    $region34: #{tpu_custom_call.1} parent=1 // pred_check
      _
    $region35: #{tpu_custom_call.1} parent=1 // pred_check_branch
      %281 = sbr.rel (0) target = $region37
    $region36: #{tpu_custom_call.1} parent=1 // pred_region
      %283 = dma.done [#allocation3], 256
    $region37: #{tpu_custom_call.1} parent=1 // pred_fallthru
      _
    %284 = vsyncpa [#allocation3], 1

</llo_original>
